<compile_context>
chip_gen: v5e
topology: v5e:2x2
jax: 0.10.0
libtpu: 0.0.40
codegen_flags: <defaults>
</compile_context>

<pallas_src>
import functools

import jax
import jax.numpy as jnp
from jax.experimental import pallas as pl
from jax.experimental.pallas import tpu as pltpu

BN_EPS = 1e-5
LANE = 128


def _round_up(n: int, m: int) -> int:
    return ((n + m - 1) // m) * m


# --------------------------------------------------------------------------
# Kernel
# --------------------------------------------------------------------------
def _make_coin_agent_kernel(num_layers: int, batch: int):
    """Kernel signature: (x, w_stack, bn_stack, w_out, b_out, out)."""
    inv_b = 1.0 / float(batch)

    def kernel(x_ref, w_ref, bn_ref, wo_ref, bo_ref, out_ref):
        h = x_ref[...].astype(jnp.float32)

        # Statically unrolled layer loop: static-index weight loads, full
        # cross-layer scheduling visibility.  (For very large num_layers use
        # lax.fori_loop(..., unroll=True) to bound code size.)
        for l in range(num_layers):
            # Linear (bias folded away: train-mode BN mean-subtraction cancels
            # it exactly).  bf16 x bf16 -> f32 accumulate on the MXU.
            z = jnp.dot(h.astype(jnp.bfloat16), w_ref[l],
                        preferred_element_type=jnp.float32)
            # Two-pass batch statistics in f32 (matches reference, robust).
            mean = jnp.sum(z, axis=0, keepdims=True) * inv_b         # (1, Dp)
            d = z - mean                                             # (B, Dp)
            var = jnp.sum(d * d, axis=0, keepdims=True) * inv_b      # (1, Dp)
            gb = bn_ref[l]                                           # (2, Dp)
            scale = gb[0:1, :] * jax.lax.rsqrt(var + BN_EPS)         # gamma/std
            # Fused normalize + affine + ReLU (mean already subtracted in d).
            h = jnp.maximum(d * scale + gb[1:2, :], 0.0)

        out_ref[...] = (
            jnp.dot(h.astype(jnp.bfloat16), wo_ref[...],
                    preferred_element_type=jnp.float32) + bo_ref[...]
        ).astype(out_ref.dtype)

    return kernel


# --------------------------------------------------------------------------
# Parameter init (PyTorch-style) and one-time packing
# --------------------------------------------------------------------------
def init_coin_agent_params(key, num_coins: int, num_layers: int):
    """Deterministic parameter init mimicking PyTorch defaults (uniform fan-in)."""
    d = 2 * num_coins + 1
    params = {"blocks": [], "out": None}
    for _ in range(num_layers):
        key, kw, kb = jax.random.split(key, 3)
        bound = 1.0 / jnp.sqrt(d)
        w = jax.random.uniform(kw, (d, d), jnp.float32, -bound, bound)   # (out, in)
        b = jax.random.uniform(kb, (d,), jnp.float32, -bound, bound)
        gamma = jnp.ones((d,), jnp.float32)
        beta = jnp.zeros((d,), jnp.float32)
        params["blocks"].append((w, b, gamma, beta))
    key, kw, kb = jax.random.split(key, 3)
    bound = 1.0 / jnp.sqrt(d)
    w_out = jax.random.uniform(kw, (num_coins, d), jnp.float32, -bound, bound)
    b_out = jax.random.uniform(kb, (num_coins,), jnp.float32, -bound, bound)
    params["out"] = (w_out, b_out)
    return params


def pack_coin_agent_params(params, num_coins: int, num_layers: int):
    """One-time packing: pad features to 128 lanes, transpose to (in, out),
    cast weights to bf16.  Call once; reuse the result for every forward."""
    d = 2 * num_coins + 1
    d_pad = _round_up(max(d, LANE), LANE)
    o_pad = _round_up(max(num_coins, LANE), LANE)

    w_stack = jnp.zeros((num_layers, d_pad, d_pad), jnp.bfloat16)
    bn_stack = jnp.zeros((num_layers, 2, d_pad), jnp.float32)
    for l, (w, b, gamma, beta) in enumerate(params["blocks"]):
        w_stack = w_stack.at[l, :d, :d].set(w.T.astype(jnp.bfloat16))
        bn_stack = bn_stack.at[l, 0, :d].set(gamma)
        bn_stack = bn_stack.at[l, 1, :d].set(beta)
        # Linear bias `b` intentionally NOT packed: exact cancellation under
        # train-mode BatchNorm.  (Eval-mode inference would need it back.)
    w_out, b_out = params["out"]
    wo_pad = jnp.zeros((d_pad, o_pad), jnp.bfloat16).at[:d, :num_coins].set(
        w_out.T.astype(jnp.bfloat16))
    bo_pad = jnp.zeros((1, o_pad), jnp.float32).at[0, :num_coins].set(b_out)
    return {"w": w_stack, "bn": bn_stack, "wo": wo_pad, "bo": bo_pad,
            "d": d, "d_pad": d_pad, "o_pad": o_pad}


# --------------------------------------------------------------------------
# Forward
# --------------------------------------------------------------------------
@functools.partial(jax.jit, static_argnames=("num_coins",))
def coin_agent_forward_padded(x, packed, *, num_coins: int):
    """x: (B, 2*num_coins+1) f32 -> (B, 128) f32 padded logits.

    Columns [num_coins:] are exactly zero; slice outside only if the consumer
    truly needs the narrow view (keeps the kernel store lane-dense)."""
    batch, d = x.shape
    assert d == 2 * num_coins + 1
    num_layers, _, d_pad = packed["w"].shape[0], packed["w"].shape[1], packed["w"].shape[2]
    o_pad = packed["wo"].shape[1]

    x_pad = jnp.zeros((batch, d_pad), jnp.float32).at[:, :d].set(
        x.astype(jnp.float32))

    kernel = _make_coin_agent_kernel(num_layers, batch)
    vmem = pl.BlockSpec(memory_space=pltpu.MemorySpace.VMEM)

    # Generation-aware VMEM budget: actual residency (no grid -> no double
    # buffering) + a working-set allowance for live activation copies.
    resident = (x_pad.size * 4                     # input, f32
                + packed["w"].size * 2             # layer weights, bf16
                + packed["bn"].size * 4            # gamma/beta, f32
                + packed["wo"].size * 2            # out weights, bf16
                + packed["bo"].size * 4            # out bias, f32
                + batch * o_pad * 4)               # output, f32
    work = 4 * batch * d_pad * 4                   # h, z, d, temporaries (f32)
    try:
        cap = int(getattr(pltpu.get_tpu_info(), "vmem_capacity_bytes", 64 << 20))
    except Exception:  # pragma: no cover - interpret/CPU fallback
        cap = 64 << 20
    vmem_limit = int(min(max(resident + work + (2 << 20), 16 << 20),
                         (cap * 7) // 8))

    out_pad = pl.pallas_call(
        kernel,
        out_shape=jax.ShapeDtypeStruct((batch, o_pad), jnp.float32),
        in_specs=[vmem] * 5,
        out_specs=vmem,
        compiler_params=pltpu.CompilerParams(vmem_limit_bytes=vmem_limit),
    )(x_pad, packed["w"], packed["bn"], packed["wo"], packed["bo"])
    return out_pad


# --------------------------------------------------------------------------
# References
# --------------------------------------------------------------------------
def _reference_forward_f32(x, params):
    """Pure-f32 JAX reference mirroring the PyTorch module (train-mode BN)."""
    h = x
    for (w, b, gamma, beta) in params["blocks"]:
        z = h @ w.T + b
        mean = jnp.mean(z, axis=0, keepdims=True)
        var = jnp.mean((z - mean) ** 2, axis=0, keepdims=True)
        z = (z - mean) / jnp.sqrt(var + BN_EPS)
        h = jnp.maximum(z * gamma + beta, 0.0)
    w_out, b_out = params["out"]
    return h @ w_out.T + b_out


def _reference_forward_bf16mm(x, params):
    """Same math but with bf16 matmul inputs / f32 accumulation, matching the
    kernel's MXU precision exactly (for a tight structural check)."""
    def mm(a, w_t):  # a @ w_t with bf16 operands, f32 accumulate
        return jnp.dot(a.astype(jnp.bfloat16), w_t.astype(jnp.bfloat16),
                       preferred_element_type=jnp.float32)
    h = x.astype(jnp.float32)
    for (w, b, gamma, beta) in params["blocks"]:
        z = mm(h, w.T) + b
        mean = jnp.mean(z, axis=0, keepdims=True)
        var = jnp.mean((z - mean) ** 2, axis=0, keepdims=True)
        z = (z - mean) / jnp.sqrt(var + BN_EPS)
        h = jnp.maximum(z * gamma + beta, 0.0)
    w_out, b_out = params["out"]
    return mm(h, w_out.T) + b_out


# --------------------------------------------------------------------------
# Test
# --------------------------------------------------------------------------
if __name__ == "__main__":
    num_coins = 4          # -> feature dim D = 2*4 + 1 = 9
    num_layers = 2
    batch = 8

    key = jax.random.PRNGKey(0)
    key, kx = jax.random.split(key)
    x = jax.random.normal(kx, (batch, 2 * num_coins + 1), jnp.float32)

    params = init_coin_agent_params(key, num_coins, num_layers)
    packed = pack_coin_agent_params(params, num_coins, num_layers)   # once

    out_pad = coin_agent_forward_padded(x, packed, num_coins=num_coins)
    out_pad = jax.block_until_ready(out_pad)
    out = out_pad[:, :num_coins]           # narrow view only where needed

    assert out_pad.shape == (batch, LANE), out_pad.shape
    # Padded logit columns must be exactly zero.
    assert jnp.all(out_pad[:, num_coins:] == 0.0)

    # Tight check against the matching-precision (bf16 matmul) reference.
    ref_bf16 = _reference_forward_bf16mm(x, params)
    assert jnp.allclose(out, ref_bf16, atol=2e-3, rtol=2e-3), (out, ref_bf16)

    # Loose check against the pure-f32 reference (bf16 MXU inputs).
    ref_f32 = _reference_forward_f32(x, params)
    assert jnp.allclose(out, ref_f32, atol=1e-1, rtol=1e-1), (out, ref_f32)

    print("KERNEL_OK")
</pallas_src>

<mosaic_0001>
module attributes {stable_mosaic.version = 11 : i64} {
  func.func @kernel(%arg0: memref<8x128xf32, #tpu.memory_space<vmem>>, %arg1: memref<2x128x128xbf16, #tpu.memory_space<vmem>>, %arg2: memref<2x2x128xf32, #tpu.memory_space<vmem>>, %arg3: memref<128x128xbf16, #tpu.memory_space<vmem>>, %arg4: memref<1x128xf32, #tpu.memory_space<vmem>>, %arg5: memref<8x128xf32, #tpu.memory_space<vmem>>) attributes {dimension_semantics = [], scalar_prefetch = 0 : i64, scratch_operands = 0 : i64, tpu.core_type = #tpu.core_type<tc>} {
    %c0 = arith.constant 0 : index
    %c0_0 = arith.constant 0 : index
    %0 = vector.load %arg0[%c0, %c0_0] : memref<8x128xf32, #tpu.memory_space<vmem>>, vector<8x128xf32>
    %1 = arith.truncf %0 : vector<8x128xf32> to vector<8x128xbf16>
    %c0_1 = arith.constant 0 : index
    %c0_2 = arith.constant 0 : index
    %c0_3 = arith.constant 0 : index
    %2 = vector.load %arg1[%c0_1, %c0_2, %c0_3] : memref<2x128x128xbf16, #tpu.memory_space<vmem>>, vector<1x128x128xbf16>
    %3 = vector.shape_cast %2 : vector<1x128x128xbf16> to vector<128x128xbf16>
    %cst = arith.constant dense<0.000000e+00> : vector<8x128xf32>
    %4 = tpu.matmul %1, %3, %cst {dimension_numbers = #tpu.dot_dimension_numbers<[1], [0], [0], [1], [0, 0, 1, 1], [], []>} : vector<8x128xbf16>, vector<128x128xbf16>, vector<8x128xf32> -> vector<8x128xf32>
    %cst_4 = arith.constant dense<0.000000e+00> : vector<128xf32>
    %5 = vector.multi_reduction <add>, %4, %cst_4 [0] : vector<8x128xf32> to vector<128xf32>
    %6 = vector.shape_cast %5 : vector<128xf32> to vector<1x128xf32>
    %cst_5 = arith.constant 1.250000e-01 : f32
    %7 = vector.broadcast %cst_5 : f32 to vector<1x128xf32>
    %8 = arith.mulf %6, %7 : vector<1x128xf32>
    %9 = vector.broadcast %8 : vector<1x128xf32> to vector<8x128xf32>
    %10 = arith.subf %4, %9 : vector<8x128xf32>
    %11 = arith.mulf %10, %10 : vector<8x128xf32>
    %cst_6 = arith.constant dense<0.000000e+00> : vector<128xf32>
    %12 = vector.multi_reduction <add>, %11, %cst_6 [0] : vector<8x128xf32> to vector<128xf32>
    %13 = vector.shape_cast %12 : vector<128xf32> to vector<1x128xf32>
    %cst_7 = arith.constant 1.250000e-01 : f32
    %14 = vector.broadcast %cst_7 : f32 to vector<1x128xf32>
    %15 = arith.mulf %13, %14 : vector<1x128xf32>
    %c0_8 = arith.constant 0 : index
    %c0_9 = arith.constant 0 : index
    %c0_10 = arith.constant 0 : index
    %16 = vector.load %arg2[%c0_8, %c0_9, %c0_10] : memref<2x2x128xf32, #tpu.memory_space<vmem>>, vector<1x2x128xf32>
    %17 = vector.shape_cast %16 : vector<1x2x128xf32> to vector<2x128xf32>
    %18 = vector.extract_strided_slice %17 {offsets = [0, 0], sizes = [1, 128], strides = [1, 1]} : vector<2x128xf32> to vector<1x128xf32>
    %cst_11 = arith.constant 9.99999974E-6 : f32
    %19 = vector.broadcast %cst_11 : f32 to vector<1x128xf32>
    %20 = arith.addf %15, %19 : vector<1x128xf32>
    %21 = math.rsqrt %20 : vector<1x128xf32>
    %22 = arith.mulf %18, %21 : vector<1x128xf32>
    %23 = vector.broadcast %22 : vector<1x128xf32> to vector<8x128xf32>
    %24 = arith.mulf %10, %23 : vector<8x128xf32>
    %25 = vector.extract_strided_slice %17 {offsets = [1, 0], sizes = [1, 128], strides = [1, 1]} : vector<2x128xf32> to vector<1x128xf32>
    %26 = vector.broadcast %25 : vector<1x128xf32> to vector<8x128xf32>
    %27 = arith.addf %24, %26 : vector<8x128xf32>
    %cst_12 = arith.constant 0.000000e+00 : f32
    %28 = vector.broadcast %cst_12 : f32 to vector<8x128xf32>
    %29 = arith.maximumf %27, %28 : vector<8x128xf32>
    %30 = arith.truncf %29 : vector<8x128xf32> to vector<8x128xbf16>
    %c1 = arith.constant 1 : index
    %c0_13 = arith.constant 0 : index
    %c0_14 = arith.constant 0 : index
    %31 = vector.load %arg1[%c1, %c0_13, %c0_14] : memref<2x128x128xbf16, #tpu.memory_space<vmem>>, vector<1x128x128xbf16>
    %32 = vector.shape_cast %31 : vector<1x128x128xbf16> to vector<128x128xbf16>
    %cst_15 = arith.constant dense<0.000000e+00> : vector<8x128xf32>
    %33 = tpu.matmul %30, %32, %cst_15 {dimension_numbers = #tpu.dot_dimension_numbers<[1], [0], [0], [1], [0, 0, 1, 1], [], []>} : vector<8x128xbf16>, vector<128x128xbf16>, vector<8x128xf32> -> vector<8x128xf32>
    %cst_16 = arith.constant dense<0.000000e+00> : vector<128xf32>
    %34 = vector.multi_reduction <add>, %33, %cst_16 [0] : vector<8x128xf32> to vector<128xf32>
    %35 = vector.shape_cast %34 : vector<128xf32> to vector<1x128xf32>
    %cst_17 = arith.constant 1.250000e-01 : f32
    %36 = vector.broadcast %cst_17 : f32 to vector<1x128xf32>
    %37 = arith.mulf %35, %36 : vector<1x128xf32>
    %38 = vector.broadcast %37 : vector<1x128xf32> to vector<8x128xf32>
    %39 = arith.subf %33, %38 : vector<8x128xf32>
    %40 = arith.mulf %39, %39 : vector<8x128xf32>
    %cst_18 = arith.constant dense<0.000000e+00> : vector<128xf32>
    %41 = vector.multi_reduction <add>, %40, %cst_18 [0] : vector<8x128xf32> to vector<128xf32>
    %42 = vector.shape_cast %41 : vector<128xf32> to vector<1x128xf32>
    %cst_19 = arith.constant 1.250000e-01 : f32
    %43 = vector.broadcast %cst_19 : f32 to vector<1x128xf32>
    %44 = arith.mulf %42, %43 : vector<1x128xf32>
    %c1_20 = arith.constant 1 : index
    %c0_21 = arith.constant 0 : index
    %c0_22 = arith.constant 0 : index
    %45 = vector.load %arg2[%c1_20, %c0_21, %c0_22] : memref<2x2x128xf32, #tpu.memory_space<vmem>>, vector<1x2x128xf32>
    %46 = vector.shape_cast %45 : vector<1x2x128xf32> to vector<2x128xf32>
    %47 = vector.extract_strided_slice %46 {offsets = [0, 0], sizes = [1, 128], strides = [1, 1]} : vector<2x128xf32> to vector<1x128xf32>
    %cst_23 = arith.constant 9.99999974E-6 : f32
    %48 = vector.broadcast %cst_23 : f32 to vector<1x128xf32>
    %49 = arith.addf %44, %48 : vector<1x128xf32>
    %50 = math.rsqrt %49 : vector<1x128xf32>
    %51 = arith.mulf %47, %50 : vector<1x128xf32>
    %52 = vector.broadcast %51 : vector<1x128xf32> to vector<8x128xf32>
    %53 = arith.mulf %39, %52 : vector<8x128xf32>
    %54 = vector.extract_strided_slice %46 {offsets = [1, 0], sizes = [1, 128], strides = [1, 1]} : vector<2x128xf32> to vector<1x128xf32>
    %55 = vector.broadcast %54 : vector<1x128xf32> to vector<8x128xf32>
    %56 = arith.addf %53, %55 : vector<8x128xf32>
    %cst_24 = arith.constant 0.000000e+00 : f32
    %57 = vector.broadcast %cst_24 : f32 to vector<8x128xf32>
    %58 = arith.maximumf %56, %57 : vector<8x128xf32>
    %59 = arith.truncf %58 : vector<8x128xf32> to vector<8x128xbf16>
    %c0_25 = arith.constant 0 : index
    %c0_26 = arith.constant 0 : index
    %60 = vector.load %arg3[%c0_25, %c0_26] : memref<128x128xbf16, #tpu.memory_space<vmem>>, vector<128x128xbf16>
    %cst_27 = arith.constant dense<0.000000e+00> : vector<8x128xf32>
    %61 = tpu.matmul %59, %60, %cst_27 {dimension_numbers = #tpu.dot_dimension_numbers<[1], [0], [0], [1], [0, 0, 1, 1], [], []>} : vector<8x128xbf16>, vector<128x128xbf16>, vector<8x128xf32> -> vector<8x128xf32>
    %c0_28 = arith.constant 0 : index
    %c0_29 = arith.constant 0 : index
    %62 = vector.load %arg4[%c0_28, %c0_29] : memref<1x128xf32, #tpu.memory_space<vmem>>, vector<1x128xf32>
    %63 = vector.broadcast %62 : vector<1x128xf32> to vector<8x128xf32>
    %64 = arith.addf %61, %63 : vector<8x128xf32>
    %c0_30 = arith.constant 0 : index
    %c0_31 = arith.constant 0 : index
    %65 = vector.load %arg5[%c0_30, %c0_31] : memref<8x128xf32, #tpu.memory_space<vmem>>, vector<8x128xf32>
    tpu.vector_store %arg5[%c0_30, %c0_31], %64 {strides = array<i32>} : memref<8x128xf32, #tpu.memory_space<vmem>>, vector<8x128xf32>,
    return
  }
}

</mosaic_0001>

<llo_original>
// kernel: coin_agent_forward_padded.1
$region0: #{coin_agent_forward_padded.1}
  #allocation0 [shape = 'u32[]', space=smem, size = 0x4, offset = 0x4, fixed_abs, tag = 'smem constant byte address 0x4 - core index']
  #allocation1 [shape = 'u32[72,128]{1,0:T(1,128)}', space=vmem, size = 0x9000, scoped, tag = 'internal scratch']
  %s0 = inlined_call_operand.vmem [shape: f32[8,128], index: 0, kind: input, shape index: {}]
  %s1 = inlined_call_operand.hbm [shape: bf16[2,128,128], index: 1, kind: input, shape index: {}]
  %s2 = inlined_call_operand.vmem [shape: f32[2,2,128], index: 2, kind: input, shape index: {}]
  %s3 = inlined_call_operand.hbm [shape: bf16[128,128], index: 3, kind: input, shape index: {}]
  %s4 = inlined_call_operand.vmem [shape: f32[1,128], index: 4, kind: input, shape index: {}]
  %s5 = inlined_call_operand.hbm [shape: f32[8,128], index: 5, kind: output, shape index: {}]
  %s6 = sld [smem:[#allocation0]]
  $region38: #{coin_agent_forward_padded.1} parent=0
    _
  %s8 = ssub.s32 1, %s6
  %s9 = scalar_select 0, %s8, %s6
  $region1: #{coin_agent_forward_padded.1} parent=0
    #allocation2 [shape = 'u8[65536]{0}', space=vmem, size = 0x10000, scoped, tag = 'input window, operand 1, single buffered']
    #allocation3 [shape = 's32[1]{0}', space=sflag, size = 0x4, scoped, tag = 'scoped memory for coin_agent_forward_padded.1']
    #allocation4 [shape = 's32[1]{0}', space=sflag, size = 0x4, scoped, tag = 'scoped memory for coin_agent_forward_padded.1']
    #allocation5 [shape = 'u8[32768]{0}', space=vmem, size = 0x8000, scoped, tag = 'input window, operand 3, single buffered']
    #allocation6 [shape = 's32[1]{0}', space=sflag, size = 0x4, scoped, tag = 'scoped memory for coin_agent_forward_padded.1']
    #allocation7 [shape = 'u8[4096]{0}', space=vmem, size = 0x1000, scoped, tag = 'output window, operand 0, single buffered']
    %10 = vsyncpa [#allocation3], 0
    %11 = vsyncpa [#allocation6], 0
    %12 = vsyncpa [#allocation4], 0
    // Predicated region
    $region2: #{coin_agent_forward_padded.1} parent=1 // pred_check
      _
    $region3: #{coin_agent_forward_padded.1} parent=1 // pred_check_branch
      %14 = sbr.rel (0) target = $region5
    $region4: #{coin_agent_forward_padded.1} parent=1 // pred_region
      _
    $region5: #{coin_agent_forward_padded.1} parent=1 // pred_fallthru
      _
    // Predicated region
    $region6: #{coin_agent_forward_padded.1} parent=1 // pred_check
      _
    $region7: #{coin_agent_forward_padded.1} parent=1 // pred_check_branch
      %16 = sbr.rel (0) target = $region9
    $region8: #{coin_agent_forward_padded.1} parent=1 // pred_region
      %18 = vsyncadd [#allocation3], 0
      %s19 = sshll.u32 %s1, 4
      %s20 = int_to_ptr.hbm [resolvable:$true] %s19
      %s21 = sshll.u32 [#allocation2], 4
      %s22 = int_to_ptr.vmem [resolvable:$true] %s21
      %27 = dma.hbm_to_vmem [thread:$0]  %s20, 2048, %s22, [#allocation3], 64, 64, 4
    $region9: #{coin_agent_forward_padded.1} parent=1 // pred_fallthru
      _
    // Predicated region
    $region10: #{coin_agent_forward_padded.1} parent=1 // pred_check
      _
    $region11: #{coin_agent_forward_padded.1} parent=1 // pred_check_branch
      %29 = sbr.rel (0) target = $region13
    $region12: #{coin_agent_forward_padded.1} parent=1 // pred_region
      _
    $region13: #{coin_agent_forward_padded.1} parent=1 // pred_fallthru
      _
    // Predicated region
    $region14: #{coin_agent_forward_padded.1} parent=1 // pred_check
      _
    $region15: #{coin_agent_forward_padded.1} parent=1 // pred_check_branch
      %31 = sbr.rel (0) target = $region17
    $region16: #{coin_agent_forward_padded.1} parent=1 // pred_region
      %33 = vsyncadd [#allocation6], 0
      %s34 = sshll.u32 %s3, 4
      %s35 = int_to_ptr.hbm [resolvable:$true] %s34
      %s36 = sshll.u32 [#allocation5], 4
      %s37 = int_to_ptr.vmem [resolvable:$true] %s36
      %42 = dma.hbm_to_vmem [thread:$0]  %s35, 1024, %s37, [#allocation6], 64, 64, 4
    $region17: #{coin_agent_forward_padded.1} parent=1 // pred_fallthru
      _
    // Predicated region
    $region18: #{coin_agent_forward_padded.1} parent=1 // pred_check
      _
    $region19: #{coin_agent_forward_padded.1} parent=1 // pred_check_branch
      %44 = sbr.rel (0) target = $region21
    $region20: #{coin_agent_forward_padded.1} parent=1 // pred_region
      _
    $region21: #{coin_agent_forward_padded.1} parent=1 // pred_fallthru
      _
    // Predicated region
    $region22: #{coin_agent_forward_padded.1} parent=1 // pred_check
      _
    $region23: #{coin_agent_forward_padded.1} parent=1 // pred_check_branch
      %46 = sbr.rel (0) target = $region25
    $region24: #{coin_agent_forward_padded.1} parent=1 // pred_region
      %48 = dma.done [#allocation3], 2048
    $region25: #{coin_agent_forward_padded.1} parent=1 // pred_fallthru
      _
    // Predicated region
    $region26: #{coin_agent_forward_padded.1} parent=1 // pred_check
      _
    $region27: #{coin_agent_forward_padded.1} parent=1 // pred_check_branch
      %50 = sbr.rel (0) target = $region29
    $region28: #{coin_agent_forward_padded.1} parent=1 // pred_region
      %52 = dma.done [#allocation6], 1024
    $region29: #{coin_agent_forward_padded.1} parent=1 // pred_fallthru
      _
    %v53 = vld [vmem:[%s0] sm:$0xff]
    %v54 = vpack.c.bf16 %v53, %v53
    %v55 = vld [vmem:[#allocation2] sm:$0xf]
    %v56 = vld [vmem:[#allocation2 + $0x4] sm:$0xf]
    %v57 = vld [vmem:[#allocation2 + $0x8] sm:$0xf]
    %v58 = vld [vmem:[#allocation2 + $0xc] sm:$0xf]
    %v59 = vld [vmem:[#allocation2 + $0x10] sm:$0xf]
    %v60 = vld [vmem:[#allocation2 + $0x14] sm:$0xf]
    %v61 = vld [vmem:[#allocation2 + $0x18] sm:$0xf]
    %v62 = vld [vmem:[#allocation2 + $0x1c] sm:$0xf]
    %v63 = vld [vmem:[#allocation2 + $0x20] sm:$0xf]
    %v64 = vld [vmem:[#allocation2 + $0x24] sm:$0xf]
    %v65 = vld [vmem:[#allocation2 + $0x28] sm:$0xf]
    %v66 = vld [vmem:[#allocation2 + $0x2c] sm:$0xf]
    %v67 = vld [vmem:[#allocation2 + $0x30] sm:$0xf]
    %v68 = vld [vmem:[#allocation2 + $0x34] sm:$0xf]
    %v69 = vld [vmem:[#allocation2 + $0x38] sm:$0xf]
    %v70 = vld [vmem:[#allocation2 + $0x3c] sm:$0xf]
    %v87 = vunpack.c.l.b16 %v55
    %v88 = vunpack.c.l.b16 %v56
    %v89 = vunpack.c.l.b16 %v57
    %v90 = vunpack.c.l.b16 %v58
    %v91 = vunpack.c.l.b16 %v59
    %v92 = vunpack.c.l.b16 %v60
    %v93 = vunpack.c.l.b16 %v61
    %v94 = vunpack.c.l.b16 %v62
    %v95 = vunpack.c.l.b16 %v63
    %v96 = vunpack.c.l.b16 %v64
    %v97 = vunpack.c.l.b16 %v65
    %v98 = vunpack.c.l.b16 %v66
    %v99 = vunpack.c.l.b16 %v67
    %v100 = vunpack.c.l.b16 %v68
    %v101 = vunpack.c.l.b16 %v69
    %v102 = vunpack.c.l.b16 %v70
    %v103 = vpack.c.b16 %v88, %v87
    %v104 = vpack.c.b16 %v90, %v89
    %v105 = vpack.c.b16 %v92, %v91
    %v106 = vpack.c.b16 %v94, %v93
    %v107 = vpack.c.b16 %v96, %v95
    %v108 = vpack.c.b16 %v98, %v97
    %v109 = vpack.c.b16 %v100, %v99
    %v110 = vpack.c.b16 %v102, %v101
    %119 = vmatpush.bf16.msra.mxu0 %v110
    %120 = vmatpush.bf16.msra.mxu0 %v109
    %121 = vmatpush.bf16.msra.mxu0 %v108
    %122 = vmatpush.bf16.msra.mxu0 %v107
    %123 = vmatpush.bf16.msra.mxu0 %v106
    %124 = vmatpush.bf16.msra.mxu0 %v105
    %125 = vmatpush.bf16.msra.mxu0 %v104
    %126 = vmatpush.bf16.msra.mxu0 %v103
    %127 = vmatmul.bf16.gmra.mxu0 %v54
    %v128 = vpop.f32.mrf.mxu0
    %v129 = vadd.f32 0.0, %v128
    %v130 = vpop.f32.mrf.mxu0
    %131 = vdwg.mxu0
    %v132 = vrot.slane %v129, 4
    %v133 = vadd.f32 %v129, %v132
    %v134 = vrot.slane %v133, 2
    %v135 = vadd.f32 %v133, %v134
    %v136 = vrot.slane %v135, 1
    %v137 = vadd.f32 %v135, %v136
    %v138 = vmul.f32 %v137, 0.125
    %v139 = vsub.f32 %v129, %v138
    %v140 = vmul.f32 %v139, %v139
    %v141 = vrot.slane %v140, 4
    %v142 = vadd.f32 %v140, %v141
    %v143 = vrot.slane %v142, 2
    %v144 = vadd.f32 %v142, %v143
    %v145 = vrot.slane %v144, 1
    %v146 = vadd.f32 %v144, %v145
    %v147 = vmul.f32 %v146, 0.125
    %v148 = vld [vmem:[%s2] sm:$0x3]
    %v149 = vadd.f32 %v147, 1e-05
    %v150 = vrsqrt.pop %v149
    %v151 = vmul.f32 %v150, %v149
    %v152 = vmul.f32 %v151, %v150
    %v153 = vmul.f32 0.5, %v152
    %v154 = vsub.f32 1.5, %v153
    %v155 = vmul.f32 %v150, %v154
    %vm156 = vweird.f32 %v149
    %vm157 = vweird.f32 %v150
    %vm158 = vmor %vm156, %vm157
    %v159 = vsel %vm158, %v150, %v155
    %v160 = vmul.f32 %v148, %v159
    %v161 = vperm.slane %v160, 0
    %v162 = vmul.f32 %v139, %v161
    %v163 = vperm.slane %v148, 1
    %v164 = vadd.f32 %v162, %v163
    %v165 = vmax.f32 %v164, 0.0
    %v166 = vpack.c.bf16 %v165, %v165
    %s167 = scalar_lea.vmem [#allocation2], 64
    %v168 = vld [vmem:[%s167] sm:$0xf]
    %v169 = vld [vmem:[%s167 + $0x4] sm:$0xf]
    %v170 = vld [vmem:[%s167 + $0x8] sm:$0xf]
    %v171 = vld [vmem:[%s167 + $0xc] sm:$0xf]
    %v172 = vld [vmem:[%s167 + $0x10] sm:$0xf]
    %v173 = vld [vmem:[%s167 + $0x14] sm:$0xf]
    %v174 = vld [vmem:[%s167 + $0x18] sm:$0xf]
    %v175 = vld [vmem:[%s167 + $0x1c] sm:$0xf]
    %v176 = vld [vmem:[%s167 + $0x20] sm:$0xf]
    %v177 = vld [vmem:[%s167 + $0x24] sm:$0xf]
    %v178 = vld [vmem:[%s167 + $0x28] sm:$0xf]
    %v179 = vld [vmem:[%s167 + $0x2c] sm:$0xf]
    %v180 = vld [vmem:[%s167 + $0x30] sm:$0xf]
    %v181 = vld [vmem:[%s167 + $0x34] sm:$0xf]
    %v182 = vld [vmem:[%s167 + $0x38] sm:$0xf]
    %v183 = vld [vmem:[%s167 + $0x3c] sm:$0xf]
    %v200 = vunpack.c.l.b16 %v168
    %v201 = vunpack.c.l.b16 %v169
    %v202 = vunpack.c.l.b16 %v170
    %v203 = vunpack.c.l.b16 %v171
    %v204 = vunpack.c.l.b16 %v172
    %v205 = vunpack.c.l.b16 %v173
    %v206 = vunpack.c.l.b16 %v174
    %v207 = vunpack.c.l.b16 %v175
    %v208 = vunpack.c.l.b16 %v176
    %v209 = vunpack.c.l.b16 %v177
    %v210 = vunpack.c.l.b16 %v178
    %v211 = vunpack.c.l.b16 %v179
    %v212 = vunpack.c.l.b16 %v180
    %v213 = vunpack.c.l.b16 %v181
    %v214 = vunpack.c.l.b16 %v182
    %v215 = vunpack.c.l.b16 %v183
    %v216 = vpack.c.b16 %v201, %v200
    %v217 = vpack.c.b16 %v203, %v202
    %v218 = vpack.c.b16 %v205, %v204
    %v219 = vpack.c.b16 %v207, %v206
    %v220 = vpack.c.b16 %v209, %v208
    %v221 = vpack.c.b16 %v211, %v210
    %v222 = vpack.c.b16 %v213, %v212
    %v223 = vpack.c.b16 %v215, %v214
    %232 = vmatpush.bf16.msra.mxu0 %v223
    %233 = vmatpush.bf16.msra.mxu0 %v222
    %234 = vmatpush.bf16.msra.mxu0 %v221
    %235 = vmatpush.bf16.msra.mxu0 %v220
    %236 = vmatpush.bf16.msra.mxu0 %v219
    %237 = vmatpush.bf16.msra.mxu0 %v218
    %238 = vmatpush.bf16.msra.mxu0 %v217
    %239 = vmatpush.bf16.msra.mxu0 %v216
    %240 = vmatmul.bf16.gmra.mxu0 %v166
    %v241 = vpop.f32.mrf.mxu0
    %v242 = vadd.f32 0.0, %v241
    %v243 = vpop.f32.mrf.mxu0
    %244 = vdwg.mxu0
    %v245 = vrot.slane %v242, 4
    %v246 = vadd.f32 %v242, %v245
    %v247 = vrot.slane %v246, 2
    %v248 = vadd.f32 %v246, %v247
    %v249 = vrot.slane %v248, 1
    %v250 = vadd.f32 %v248, %v249
    %v251 = vmul.f32 %v250, 0.125
    %v252 = vsub.f32 %v242, %v251
    %v253 = vmul.f32 %v252, %v252
    %v254 = vrot.slane %v253, 4
    %v255 = vadd.f32 %v253, %v254
    %v256 = vrot.slane %v255, 2
    %v257 = vadd.f32 %v255, %v256
    %v258 = vrot.slane %v257, 1
    %v259 = vadd.f32 %v257, %v258
    %v260 = vmul.f32 %v259, 0.125
    %s261 = scalar_lea.vmem %s2, 2
    %v262 = vld [vmem:[%s261] sm:$0x3]
    %v263 = vadd.f32 %v260, 1e-05
    %v264 = vrsqrt.pop %v263
    %v265 = vmul.f32 %v264, %v263
    %v266 = vmul.f32 %v265, %v264
    %v267 = vmul.f32 0.5, %v266
    %v268 = vsub.f32 1.5, %v267
    %v269 = vmul.f32 %v264, %v268
    %vm270 = vweird.f32 %v263
    %vm271 = vweird.f32 %v264
    %vm272 = vmor %vm270, %vm271
    %v273 = vsel %vm272, %v264, %v269
    %v274 = vmul.f32 %v262, %v273
    %v275 = vperm.slane %v274, 0
    %v276 = vmul.f32 %v252, %v275
    %v277 = vperm.slane %v262, 1
    %v278 = vadd.f32 %v276, %v277
    %v279 = vmax.f32 %v278, 0.0
    %v280 = vpack.c.bf16 %v279, %v279
    %v281 = vld [vmem:[#allocation5] sm:$0xf]
    %v282 = vld [vmem:[#allocation5 + $0x4] sm:$0xf]
    %v283 = vld [vmem:[#allocation5 + $0x8] sm:$0xf]
    %v284 = vld [vmem:[#allocation5 + $0xc] sm:$0xf]
    %v285 = vld [vmem:[#allocation5 + $0x10] sm:$0xf]
    %v286 = vld [vmem:[#allocation5 + $0x14] sm:$0xf]
    %v287 = vld [vmem:[#allocation5 + $0x18] sm:$0xf]
    %v288 = vld [vmem:[#allocation5 + $0x1c] sm:$0xf]
    %v289 = vld [vmem:[#allocation5 + $0x20] sm:$0xf]
    %v290 = vld [vmem:[#allocation5 + $0x24] sm:$0xf]
    %v291 = vld [vmem:[#allocation5 + $0x28] sm:$0xf]
    %v292 = vld [vmem:[#allocation5 + $0x2c] sm:$0xf]
    %v293 = vld [vmem:[#allocation5 + $0x30] sm:$0xf]
    %v294 = vld [vmem:[#allocation5 + $0x34] sm:$0xf]
    %v295 = vld [vmem:[#allocation5 + $0x38] sm:$0xf]
    %v296 = vld [vmem:[#allocation5 + $0x3c] sm:$0xf]
    %v297 = vld [vmem:[%s4] sm:$0x1]
    %v299 = vperm.slane %v297, 0
    %v317 = vunpack.c.l.b16 %v281
    %v318 = vunpack.c.l.b16 %v282
    %v319 = vunpack.c.l.b16 %v283
    %v320 = vunpack.c.l.b16 %v284
    %v321 = vunpack.c.l.b16 %v285
    %v322 = vunpack.c.l.b16 %v286
    %v323 = vunpack.c.l.b16 %v287
    %v324 = vunpack.c.l.b16 %v288
    %v325 = vunpack.c.l.b16 %v289
    %v326 = vunpack.c.l.b16 %v290
    %v327 = vunpack.c.l.b16 %v291
    %v328 = vunpack.c.l.b16 %v292
    %v329 = vunpack.c.l.b16 %v293
    %v330 = vunpack.c.l.b16 %v294
    %v331 = vunpack.c.l.b16 %v295
    %v332 = vunpack.c.l.b16 %v296
    %v333 = vpack.c.b16 %v318, %v317
    %v334 = vpack.c.b16 %v320, %v319
    %v335 = vpack.c.b16 %v322, %v321
    %v336 = vpack.c.b16 %v324, %v323
    %v337 = vpack.c.b16 %v326, %v325
    %v338 = vpack.c.b16 %v328, %v327
    %v339 = vpack.c.b16 %v330, %v329
    %v340 = vpack.c.b16 %v332, %v331
    %349 = vmatpush.bf16.msra.mxu0 %v340
    %350 = vmatpush.bf16.msra.mxu0 %v339
    %351 = vmatpush.bf16.msra.mxu0 %v338
    %352 = vmatpush.bf16.msra.mxu0 %v337
    %353 = vmatpush.bf16.msra.mxu0 %v336
    %354 = vmatpush.bf16.msra.mxu0 %v335
    %355 = vmatpush.bf16.msra.mxu0 %v334
    %356 = vmatpush.bf16.msra.mxu0 %v333
    %357 = vmatmul.bf16.gmra.mxu0 %v280
    %v358 = vpop.f32.mrf.mxu0
    %v359 = vadd.f32 %v299, %v358
    %v360 = vpop.f32.mrf.mxu0
    %361 = vdwg.mxu0
    %362 = vst [vmem:[#allocation7] sm:$0xff] %v359
    // Predicated region
    $region30: #{coin_agent_forward_padded.1} parent=1 // pred_check
      _
    $region31: #{coin_agent_forward_padded.1} parent=1 // pred_check_branch
      %364 = sbr.rel (0) target = $region33
    $region32: #{coin_agent_forward_padded.1} parent=1 // pred_region
      %366 = vsyncadd [#allocation4], 0
      %s368 = sshll.u32 [#allocation7], 4
      %s369 = int_to_ptr.vmem [resolvable:$true] %s368
      %s370 = sshll.u32 %s5, 4
      %s371 = int_to_ptr.hbm [resolvable:$true] %s370
      %373 = dma.vmem_to_hbm [thread:$0]  %s369, 128, %s371, [#allocation4]
    $region33: #{coin_agent_forward_padded.1} parent=1 // pred_fallthru
      _
    // Predicated region
    $region34: #{coin_agent_forward_padded.1} parent=1 // pred_check
      _
    $region35: #{coin_agent_forward_padded.1} parent=1 // pred_check_branch
      %375 = sbr.rel (0) target = $region37
    $region36: #{coin_agent_forward_padded.1} parent=1 // pred_region
      %377 = dma.done [#allocation4], 128
    $region37: #{coin_agent_forward_padded.1} parent=1 // pred_fallthru
      _
    %378 = vsyncpa [#allocation3], 1
    %379 = vsyncpa [#allocation6], 1
    %380 = vsyncpa [#allocation4], 1

</llo_original>
